<compile_context>
chip_gen: v6e
topology: v6e:2x2x1
jax: 0.10.0
libtpu: 0.0.40
codegen_flags: <defaults>
</compile_context>

<pallas_src>
import numpy as np
import jax
import jax.numpy as jnp
from jax import lax
from jax.experimental import pallas as pl
from jax.experimental.pallas import tpu as pltpu


# Raise the scoped-VMEM limit on the un-gridded fused calls (default is
# 16/32 MiB).  TODO(synk): on v7x (64 MiB physical) tile instead of raising.
VMEM_LIMIT = 64 * 1024 * 1024


# ----------------------------------------------------------------------------
# Small helpers used inside kernels
# ----------------------------------------------------------------------------
def _vmem_specs(n):
    return [pl.BlockSpec(memory_space=pltpu.MemorySpace.VMEM) for _ in range(n)]


def _bf16_dot(a, b):
    # MXU matmul: bf16 operands, f32 accumulation.
    return jnp.dot(a.astype(jnp.bfloat16), b.astype(jnp.bfloat16),
                   preferred_element_type=jnp.float32)


def _bn_lin_relu(h, b1, w2, b2):
    # (pre-Linear result) + b1 -> BatchNorm1d(batch stats, affine=False)
    # -> (Dropout p=0) -> Linear -> ReLU.  BN statistics in f32.
    h = h + b1
    mu = jnp.mean(h, axis=0, keepdims=True)
    var = jnp.mean((h - mu) ** 2, axis=0, keepdims=True)        # biased (torch)
    hn = (h - mu) * lax.rsqrt(var + 1e-5)
    return jnp.maximum(_bf16_dot(hn, w2) + b2, 0.0)


def _mlp_bn(x, w1, b1, w2, b2):
    # Linear -> BN -> Dropout(0) -> Linear -> ReLU
    return _bn_lin_relu(_bf16_dot(x, w1), b1, w2, b2)


def _gat_core(xs, xd, w_lin, a_src_bd, a_dst_bd, gbias, w1, mask_ds, ae_fn,
              heads, C):
    """GATConv (shared lin, edge-attn via ae_fn(h) -> [N_dst, N_src]) with the
    per-head outputs folded straight into the following Linear (w1)."""
    f32 = jnp.float32
    xs_p = _bf16_dot(xs, w_lin)                                  # [Ns, heads*C]
    xd_p = _bf16_dot(xd, w_lin)                                  # [Nd, heads*C]
    # per-head attention dots collapsed into one matmul per side (blockdiag)
    a_src = jnp.dot(xs_p, a_src_bd, preferred_element_type=f32)  # [Ns, heads]
    a_dst = jnp.dot(xd_p, a_dst_bd, preferred_element_type=f32)  # [Nd, heads]
    a_srcT = a_src.T                                             # [heads, Ns]
    hpre = None
    for h in range(heads):                                       # static unroll
        sl = slice(h * C, (h + 1) * C)
        logits = a_dst[:, h:h + 1] + a_srcT[h:h + 1, :] + ae_fn(h)  # [Nd, Ns]
        logits = jnp.where(logits >= 0, logits, 0.2 * logits)       # LeakyReLU
        logits = jnp.where(mask_ds > 0, logits, -1e30)
        m = jnp.max(logits, axis=-1, keepdims=True)
        p = jnp.exp(logits - m) * mask_ds
        denom = jnp.sum(p, axis=-1, keepdims=True)
        alpha = p / (denom + 1e-16)                 # exact (numerical parity)
        msg = _bf16_dot(alpha, xs_p[:, sl]) + gbias[:, sl]          # [Nd, C]
        # cat(g_0..g_H) @ W1 == sum_h g_h @ W1_h  (no concat materialized)
        contrib = _bf16_dot(msg, w1[sl, :])
        hpre = contrib if hpre is None else hpre + contrib
    return hpre


# ----------------------------------------------------------------------------
# Kernel 1: input projections (obs / feat MLP+BN)
# ----------------------------------------------------------------------------
def _stage_in_kernel(obs_x_ref, w1o_ref, b1o_ref, w2o_ref, b2o_ref,
                     feat_x_ref, w1f_ref, b1f_ref, w2f_ref, b2f_ref,
                     obs_o_ref, feat_o_ref):
    obs_o_ref[...] = _mlp_bn(obs_x_ref[...], w1o_ref[...], b1o_ref[...],
                             w2o_ref[...], b2o_ref[...])
    feat_o_ref[...] = _mlp_bn(feat_x_ref[...], w1f_ref[...], b1f_ref[...],
                              w2f_ref[...], b2f_ref[...])


def stage_in(obs_x, feat_x, params):
    No, Nf, H = obs_x.shape[0], feat_x.shape[0], params["H"]
    po, pf = params["projects_obs0"], params["projects_feat0"]
    return pl.pallas_call(
        _stage_in_kernel,
        out_shape=(jax.ShapeDtypeStruct((No, H), jnp.float32),
                   jax.ShapeDtypeStruct((Nf, H), jnp.float32)),
        in_specs=_vmem_specs(10),
        out_specs=tuple(_vmem_specs(2)),
        compiler_params=pltpu.CompilerParams(vmem_limit_bytes=VMEM_LIMIT),
    )(obs_x, po["w1"], po["b1"], po["w2"], po["b2"],
      feat_x, pf["w1"], pf["b1"], pf["w2"], pf["b2"])


# ----------------------------------------------------------------------------
# Kernel 2: GAT feat->obs + gat_linear_project + concat-project
#           + projects[0] MLP+BN + SAGEConv(mean) + ELU
#           (+ producer-fused obs projection of edge_embedding_update)
# ----------------------------------------------------------------------------
def _gat_obs_kernel(heads, C):
    def kernel(xs_ref, xd_ref, dx_ref, mask_ref,
               wlin_ref, asrc_ref, adst_ref, cde_ref, gbias_ref,
               w1_ref, b1_ref, w2_ref, b2_ref,
               wpx_ref, wpg_ref, bp_ref,
               pw1_ref, pb1_ref, pw2_ref, pb2_ref,
               adj_ref, wl_ref, bl_ref, wr_ref,
               euwo_ref, euba_ref,
               o_ref, op_ref):
        xd = xd_ref[...]
        dx = dx_ref[...]
        cde = cde_ref[...]
        # rank-1 edge embedding: e_emb[i,j,:].w_eatt[h] == dx[i,j]*c_h + d_h
        ae_fn = lambda h: dx * cde[0:1, h:h + 1] + cde[1:2, h:h + 1]
        hpre = _gat_core(xs_ref[...], xd, wlin_ref[...], asrc_ref[...],
                         adst_ref[...], gbias_ref[...], w1_ref[...],
                         mask_ref[...], ae_fn, heads, C)
        y = _bn_lin_relu(hpre, b1_ref[...], w2_ref[...], b2_ref[...])
        # obs_gat_project:  cat([obs, y]) @ Wp + bp
        obs1 = (_bf16_dot(xd, wpx_ref[...]) + _bf16_dot(y, wpg_ref[...])
                + bp_ref[...])
        # projects[0] MLP+BN, then SAGEConv(mean) + ELU
        xp = _mlp_bn(obs1, pw1_ref[...], pb1_ref[...], pw2_ref[...], pb2_ref[...])
        adj = adj_ref[...]                                       # [N_dst, N_src]
        deg = jnp.maximum(jnp.sum(adj, axis=-1, keepdims=True), 1.0)
        aggr = _bf16_dot(adj, xp) / deg                          # mean aggregation
        ysage = (_bf16_dot(aggr, wl_ref[...]) + bl_ref[...]
                 + _bf16_dot(xp, wr_ref[...]))
        obs_out = jnp.where(ysage > 0, ysage,
                            jnp.exp(jnp.minimum(ysage, 0.0)) - 1.0)     # ELU
        o_ref[...] = obs_out
        # edge_embedding_update obs projection fused at the producer
        op_ref[...] = _bf16_dot(obs_out, euwo_ref[...]) + euba_ref[...]
    return kernel


def gat_obs_block(params, feat_h, obs_h, dx, mask, adj):
    gp, mlpp = params["gat_f_to_o0"], params["gat_lin_proj_obs0"]
    projp, proj0 = params["obs_gat_project0"], params["projects0"]
    sagep, eu = params["sage0"], params["edge_update0"]
    heads, C = gp["heads"], gp["C"]
    No, H = obs_h.shape
    return pl.pallas_call(
        _gat_obs_kernel(heads, C),
        out_shape=(jax.ShapeDtypeStruct((No, H), jnp.float32),
                   jax.ShapeDtypeStruct((No, H), jnp.float32)),
        in_specs=_vmem_specs(26),
        out_specs=tuple(_vmem_specs(2)),
        compiler_params=pltpu.CompilerParams(vmem_limit_bytes=VMEM_LIMIT),
    )(feat_h, obs_h, dx, mask,
      gp["w_lin"], gp["a_src_bd"], gp["a_dst_bd"], gp["cde"], gp["bias"],
      mlpp["w1"], mlpp["b1"], mlpp["w2"], mlpp["b2"],
      projp["w_x"], projp["w_g"], projp["b"],
      proj0["w1"], proj0["b1"], proj0["w2"], proj0["b2"],
      adj, sagep["wl"], sagep["bl"], sagep["wr"],
      eu["w_o"], eu["ba2"])


# ----------------------------------------------------------------------------
# Kernel 3: GAT obs->feat + gat_linear_project + concat-project
#           (+ producer-fused feat projection of edge_embedding_update)
# ----------------------------------------------------------------------------
def _gat_feat_kernel(heads, C):
    def kernel(xs_ref, xd_ref, dx_ref, mask_ref,
               wlin_ref, asrc_ref, adst_ref, cde_ref, gbias_ref,
               w1_ref, b1_ref, w2_ref, b2_ref,
               wpx_ref, wpg_ref, bp_ref,
               euwf_ref,
               o_ref, fp_ref):
        xd = xd_ref[...]
        dxT = dx_ref[...].T                       # [Nf, No] (hoisted transpose)
        maskT = mask_ref[...].T
        cde = cde_ref[...]
        ae_fn = lambda h: dxT * cde[0:1, h:h + 1] + cde[1:2, h:h + 1]
        hpre = _gat_core(xs_ref[...], xd, wlin_ref[...], asrc_ref[...],
                         adst_ref[...], gbias_ref[...], w1_ref[...],
                         maskT, ae_fn, heads, C)
        y = _bn_lin_relu(hpre, b1_ref[...], w2_ref[...], b2_ref[...])
        feat_out = (_bf16_dot(xd, wpx_ref[...]) + _bf16_dot(y, wpg_ref[...])
                    + bp_ref[...])
        o_ref[...] = feat_out
        fp_ref[...] = _bf16_dot(feat_out, euwf_ref[...])
    return kernel


def gat_feat_block(params, obs_h, feat_h, dx, mask):
    gp, mlpp = params["gat_o_to_f0"], params["gat_lin_proj_feat0"]
    projp, eu = params["feat_gat_project0"], params["edge_update0"]
    heads, C = gp["heads"], gp["C"]
    Nf, H = feat_h.shape
    return pl.pallas_call(
        _gat_feat_kernel(heads, C),
        out_shape=(jax.ShapeDtypeStruct((Nf, H), jnp.float32),
                   jax.ShapeDtypeStruct((Nf, H), jnp.float32)),
        in_specs=_vmem_specs(17),
        out_specs=tuple(_vmem_specs(2)),
        compiler_params=pltpu.CompilerParams(vmem_limit_bytes=VMEM_LIMIT),
    )(obs_h, feat_h, dx, mask,
      gp["w_lin"], gp["a_src_bd"], gp["a_dst_bd"], gp["cde"], gp["bias"],
      mlpp["w1"], mlpp["b1"], mlpp["w2"], mlpp["b2"],
      projp["w_x"], projp["w_g"], projp["b"],
      eu["w_f"])


# ----------------------------------------------------------------------------
# Kernel 4: edge_embedding_update, gridded over obs-row tiles.
#   Rank-1 edge reconstruction (dx*u) + pre-reduction against the repeat GAT's
#   composed edge-attention weights -> only [heads, No, Nf] hits HBM.
# ----------------------------------------------------------------------------
def _edge_update_kernel(heads):
    def kernel(dx_ref, obsp_ref, featp_ref, u_ref, wbeT_ref, cc_ref, o_ref):
        # h1 = ReLU(e@W_e + obs@W_o + feat@W_f + b_a)
        #    = ReLU(dx*u + obs_p + feat_p)    (all constants folded into obs_p)
        h1 = jnp.maximum(dx_ref[...] * u_ref[...]
                         + obsp_ref[...] + featp_ref[...], 0.0)   # [TB, Nf, H]
        wbeT = wbeT_ref[...]                                      # [heads, 1, H]
        cc = cc_ref[...]                                          # [1, heads]
        for h in range(heads):                                    # static unroll
            # ae_rep[h] = (ReLU(h1) @ W_b + b_b) . w_eatt_rep[h]
            o_ref[h] = (jnp.sum(h1 * wbeT[h:h + 1], axis=-1)
                        + cc[0:1, h:h + 1])
    return kernel


def _choose_tb(No, Nf, H, heads, budget_bytes):
    """Largest obs-row tile whose working set fits the VMEM budget (review:
    avoid degenerate 1-row tiles; ~0.35us per grid step)."""
    nf_pad = ((Nf + 7) // 8) * 8
    lane = 128
    per_row = 4 * (nf_pad * max(H, lane)              # h1 intermediate (f32)
                   + 2 * nf_pad * lane                # dx3 tile (lane-padded)
                   + 2 * max(H, lane)                 # obs_p row (2 bufs)
                   + 2 * heads * max(nf_pad, lane))   # ae output tile (2 bufs)
    tb = max(1, min(No, budget_bytes // max(per_row, 1)))
    if tb >= 8:
        tb = (tb // 8) * 8
    return tb


def edge_update(dx, obs_p, feat_p, params, vmem_budget=12 * 1024 * 1024):
    eu, heads = params["edge_update0"], params["heads"]
    No, Nf = dx.shape
    H = obs_p.shape[1]
    tb = _choose_tb(No, Nf, H, heads, vmem_budget)
    # host-side (free) reshapes; the big [No,Nf,H] tensor itself never exists.
    dx3 = dx[:, :, None]                       # [No, Nf, 1]
    obs_p3 = obs_p[:, None, :]                 # [No, 1, H]
    feat_p3 = feat_p[None, :, :]               # [1, Nf, H]
    return pl.pallas_call(
        _edge_update_kernel(heads),
        out_shape=jax.ShapeDtypeStruct((heads, No, Nf), jnp.float32),
        grid=(pl.cdiv(No, tb),),
        in_specs=[
            pl.BlockSpec((tb, Nf, 1), lambda i: (i, 0, 0)),
            pl.BlockSpec((tb, 1, H), lambda i: (i, 0, 0)),
            pl.BlockSpec((1, Nf, H), lambda i: (0, 0, 0)),
            pl.BlockSpec((1, 1, H), lambda i: (0, 0, 0)),
            pl.BlockSpec((heads, 1, H), lambda i: (0, 0, 0)),
            pl.BlockSpec((1, heads), lambda i: (0, 0)),
        ],
        out_specs=pl.BlockSpec((heads, tb, Nf), lambda i: (0, i, 0)),
        compiler_params=pltpu.CompilerParams(
            dimension_semantics=("parallel",)),
    )(dx3, obs_p3, feat_p3, eu["u3"], eu["wbeT3"], eu["cconst"])


# ----------------------------------------------------------------------------
# Kernel 5: repeat GAT feat->obs + lin_proj + concat-project
#           + project_Y + log_softmax
# ----------------------------------------------------------------------------
def _gat_final_kernel(heads, C):
    def kernel(xs_ref, xd_ref, ae_ref, mask_ref,
               wlin_ref, asrc_ref, adst_ref, gbias_ref,
               w1_ref, b1_ref, w2_ref, b2_ref,
               wpx_ref, wpg_ref, bp_ref,
               yw1_ref, yb1_ref, yw2_ref, yb2_ref,
               logits_ref, logp_ref):
        xd = xd_ref[...]
        ae = ae_ref[...]                          # [heads, No, Nf] (pre-reduced)
        ae_fn = lambda h: ae[h]
        hpre = _gat_core(xs_ref[...], xd, wlin_ref[...], asrc_ref[...],
                         adst_ref[...], gbias_ref[...], w1_ref[...],
                         mask_ref[...], ae_fn, heads, C)
        y = _bn_lin_relu(hpre, b1_ref[...], w2_ref[...], b2_ref[...])
        obs2 = (_bf16_dot(xd, wpx_ref[...]) + _bf16_dot(y, wpg_ref[...])
                + bp_ref[...])
        # project_Y: Linear -> LeakyReLU(0.01) -> Linear, then log_softmax
        hY = _bf16_dot(obs2, yw1_ref[...]) + yb1_ref[...]
        hY = jnp.where(hY >= 0, hY, 0.01 * hY)
        z = _bf16_dot(hY, yw2_ref[...]) + yb2_ref[...]
        logits_ref[...] = z
        m = jnp.max(z, axis=-1, keepdims=True)
        s = z - m
        logp_ref[...] = s - jnp.log(jnp.sum(jnp.exp(s), axis=-1, keepdims=True))
    return kernel


def gat_final_block(params, feat_h, obs_h, ae_rep, mask):
    gp, mlpp = params["repeat_gat_f_to_o"], params["repeat_gat_lin_proj_obs"]
    projp, projy = params["repeat_obs_gat_project"], params["project_Y"]
    heads, C = gp["heads"], gp["C"]
    No = obs_h.shape[0]
    out = projy["w2"].shape[1]
    logits, logp = pl.pallas_call(
        _gat_final_kernel(heads, C),
        out_shape=(jax.ShapeDtypeStruct((No, out), jnp.float32),
                   jax.ShapeDtypeStruct((No, out), jnp.float32)),
        in_specs=_vmem_specs(19),
        out_specs=tuple(_vmem_specs(2)),
        compiler_params=pltpu.CompilerParams(vmem_limit_bytes=VMEM_LIMIT),
    )(feat_h, obs_h, ae_rep, mask,
      gp["w_lin"], gp["a_src_bd"], gp["a_dst_bd"], gp["bias"],
      mlpp["w1"], mlpp["b1"], mlpp["w2"], mlpp["b2"],
      projp["w_x"], projp["w_g"], projp["b"],
      projy["w1"], projy["b1"], projy["w2"], projy["b2"])
    return logp, logits


# ----------------------------------------------------------------------------
# Parameter initialization + composition of derived (pre-folded) weights
# ----------------------------------------------------------------------------
def init_linear(key, fan_in, fan_out):
    k1, k2 = jax.random.split(key)
    lim = 1.0 / np.sqrt(fan_in)
    w = jax.random.uniform(k1, (fan_in, fan_out), jnp.float32, -lim, lim)
    b = jax.random.uniform(k2, (fan_out,), jnp.float32, -lim, lim)
    return w, b


def init_mlp_bn(key, fin, fmid):
    k1, k2 = jax.random.split(key)
    w1, b1 = init_linear(k1, fin, fmid)
    w2, b2 = init_linear(k2, fmid, fmid)
    return dict(w1=w1, b1=b1.reshape(1, -1), w2=w2, b2=b2.reshape(1, -1))


def _blockdiag(att, heads, C):
    # [heads, C] -> block-diagonal [heads*C, heads]
    m = jnp.zeros((heads * C, heads), jnp.float32)
    for h in range(heads):
        m = m.at[h * C:(h + 1) * C, h].set(att[h])
    return m


def init_gat(key, in_dim, C, heads, edge_dim):
    ks = jax.random.split(key, 5)
    w_lin, _ = init_linear(ks[0], in_dim, heads * C)        # shared lin, no bias
    w_edge, _ = init_linear(ks[1], edge_dim, heads * C)     # lin_edge, no bias
    att_src = jax.random.normal(ks[2], (heads, C), jnp.float32) * 0.1
    att_dst = jax.random.normal(ks[3], (heads, C), jnp.float32) * 0.1
    att_edge = jax.random.normal(ks[4], (heads, C), jnp.float32) * 0.1
    # compose lin_edge with att_edge: edge projection never materialized
    w_eatt = jnp.stack([w_edge[:, h * C:(h + 1) * C] @ att_edge[h]
                        for h in range(heads)], axis=0)     # [heads, edge_dim]
    return dict(heads=heads, C=C, w_lin=w_lin,
                a_src_bd=_blockdiag(att_src, heads, C),
                a_dst_bd=_blockdiag(att_dst, heads, C),
                w_eatt=w_eatt,
                bias=jnp.zeros((1, heads * C), jnp.float32))


def init_cat_project(key, H):
    w, b = init_linear(key, 2 * H, H)
    return dict(w_x=w[:H], w_g=w[H:], b=b.reshape(1, -1))


def _compose_derived(p):
    """Pre-fold rank-1 edge embedding and edge-update weights (done once)."""
    H, heads = p["H"], p["heads"]
    we = p["edge_embedding0"]["w"]                          # [H]
    be = p["edge_embedding0"]["b"]                          # [H]
    # rank-1 edge attention for the two pre-update GATs:
    #   e_emb[i,j,:] . w_eatt[h] = dx[i,j]*c_h + d_h
    for name in ("gat_f_to_o0", "gat_o_to_f0"):
        g = p[name]
        c = g["w_eatt"] @ we
        d = g["w_eatt"] @ be
        g["cde"] = jnp.stack([c, d], axis=0)                # [2, heads]
    # edge_embedding_update composed with the repeat GAT's edge attention
    eu, g3 = p["edge_update0"], p["repeat_gat_f_to_o"]
    eu["u3"] = (we @ eu["w_e"]).reshape(1, 1, H)            # dx coefficient
    eu["ba2"] = (be @ eu["w_e"] + eu["b_a"]).reshape(1, H)  # folded bias
    eu["wbeT3"] = (g3["w_eatt"] @ eu["w_b"].T).reshape(heads, 1, H)
    eu["cconst"] = (g3["w_eatt"] @ eu["b_b"]).reshape(1, heads)


def init_params(key, F_obs, F_feat, H, heads, out_channels):
    keys = iter(jax.random.split(key, 32))
    nk = lambda: next(keys)
    p = {"H": H, "heads": heads}
    p["projects_obs0"] = init_mlp_bn(nk(), F_obs, H)
    p["projects_feat0"] = init_mlp_bn(nk(), F_feat, H)
    we, be = init_linear(nk(), 1, H)
    p["edge_embedding0"] = dict(w=we.reshape(-1), b=be)     # Linear(1 -> H)
    p["gat_f_to_o0"] = init_gat(nk(), H, H, heads, H)
    p["gat_lin_proj_obs0"] = init_mlp_bn(nk(), heads * H, H)
    p["obs_gat_project0"] = init_cat_project(nk(), H)
    p["projects0"] = init_mlp_bn(nk(), H, H)
    wl, bl = init_linear(nk(), H, H)
    wr, _ = init_linear(nk(), H, H)                         # SAGE lin_r: no bias
    p["sage0"] = dict(wl=wl, bl=bl.reshape(1, -1), wr=wr)
    p["gat_o_to_f0"] = init_gat(nk(), H, H, heads, H)
    p["gat_lin_proj_feat0"] = init_mlp_bn(nk(), heads * H, H)
    p["feat_gat_project0"] = init_cat_project(nk(), H)
    wa, ba = init_linear(nk(), 3 * H, H)
    wb_, bb_ = init_linear(nk(), H, H)
    p["edge_update0"] = dict(w_e=wa[:H], w_o=wa[H:2 * H], w_f=wa[2 * H:],
                             b_a=ba, w_b=wb_, b_b=bb_)
    p["repeat_gat_f_to_o"] = init_gat(nk(), H, H, heads, H)
    p["repeat_gat_lin_proj_obs"] = init_mlp_bn(nk(), heads * H, H)
    p["repeat_obs_gat_project"] = init_cat_project(nk(), H)
    wp1, bp1 = init_linear(nk(), H, H)
    wp2, bp2 = init_linear(nk(), H, out_channels)
    p["project_Y"] = dict(w1=wp1, b1=bp1.reshape(1, -1),
                          w2=wp2, b2=bp2.reshape(1, -1))
    _compose_derived(p)
    return p


# ----------------------------------------------------------------------------
# Forward pass (num_layers == 1 branch of ScalableFOGNN.forward), 5 calls
# ----------------------------------------------------------------------------
def fognn_forward(params, obs_features, feature_mask, feat_features, obs_adj,
                  data_x):
    mask_f = feature_mask.astype(jnp.float32)               # [N_obs, N_feat]
    dx = data_x.astype(jnp.float32)                         # [N_obs, N_feat]

    # 1. input MLP+BN projections (edge embedding stays implicit / rank-1)
    obs_h, feat_h = stage_in(obs_features, feat_features, params)

    # 2. GAT feat->obs + lin_proj + concat-project + projects[0] + SAGE + ELU
    obs_h, obs_p = gat_obs_block(params, feat_h, obs_h, dx, mask_f, obs_adj)

    # 3. GAT obs->feat + lin_proj + concat-project
    feat_h, feat_p = gat_feat_block(params, obs_h, feat_h, dx, mask_f)

    # 4. edge_embedding_update pre-reduced against the repeat GAT's edge
    #    attention -> only [heads, No, Nf] hits HBM (gridded over obs tiles)
    ae_rep = edge_update(dx, obs_p, feat_p, params)

    # 5. repeat GAT feat->obs + lin_proj + concat-project + project_Y + logsm
    logp, logits = gat_final_block(params, feat_h, obs_h, ae_rep, mask_f)
    return logp, logits, feat_h


# ----------------------------------------------------------------------------
# Driver
# ----------------------------------------------------------------------------
if __name__ == "__main__":
    N_obs, N_feat = 16, 8
    F_obs, F_feat = 16, 16
    # hidden size chosen lane-dense (128) per perf review; kernels are generic.
    H, heads, out_channels = 128, 2, 8

    key = jax.random.PRNGKey(0)
    kp, k1, k2, k3, k4 = jax.random.split(key, 5)

    params = init_params(kp, F_obs, F_feat, H, heads, out_channels)

    obs_features = jax.random.normal(k1, (N_obs, F_obs), jnp.float32)
    feat_features = jax.random.normal(k2, (N_feat, F_feat), jnp.float32)
    data_x = jax.random.uniform(k3, (N_obs, N_feat), jnp.float32)

    # mask: random + guaranteed non-empty rows/cols
    rnd_mask = jax.random.uniform(k4, (N_obs, N_feat)) > 0.5
    eye_mask = (jnp.arange(N_obs)[:, None] % N_feat) == jnp.arange(N_feat)[None]
    feature_mask = jnp.logical_or(rnd_mask, eye_mask)

    # obs graph (NeighborSampler surrogate): dense adjacency, edges j -> j+1, j+3
    A = np.zeros((N_obs, N_obs), np.float32)
    for j in range(N_obs):
        A[(j + 1) % N_obs, j] = 1.0
        A[(j + 3) % N_obs, j] = 1.0
    obs_adj = jnp.asarray(A)

    logp, logits, feat_out = fognn_forward(
        params, obs_features, feature_mask, feat_features, obs_adj, data_x)
    jax.block_until_ready((logp, logits, feat_out))

    assert logp.shape == (N_obs, out_channels)
    assert logits.shape == (N_obs, out_channels)
    assert feat_out.shape == (N_feat, H)
    assert bool(jnp.all(jnp.isfinite(logp)))
    assert bool(jnp.all(jnp.isfinite(feat_out)))
    print("KERNEL_OK")
</pallas_src>

<mosaic_0001>
module attributes {stable_mosaic.version = 11 : i64} {
  func.func @_stage_in_kernel(%arg0: memref<16x16xf32, #tpu.memory_space<vmem>>, %arg1: memref<16x128xf32, #tpu.memory_space<vmem>>, %arg2: memref<1x128xf32, #tpu.memory_space<vmem>>, %arg3: memref<128x128xf32, #tpu.memory_space<vmem>>, %arg4: memref<1x128xf32, #tpu.memory_space<vmem>>, %arg5: memref<8x16xf32, #tpu.memory_space<vmem>>, %arg6: memref<16x128xf32, #tpu.memory_space<vmem>>, %arg7: memref<1x128xf32, #tpu.memory_space<vmem>>, %arg8: memref<128x128xf32, #tpu.memory_space<vmem>>, %arg9: memref<1x128xf32, #tpu.memory_space<vmem>>, %arg10: memref<16x128xf32, #tpu.memory_space<vmem>>, %arg11: memref<8x128xf32, #tpu.memory_space<vmem>>) attributes {dimension_semantics = [], scalar_prefetch = 0 : i64, scratch_operands = 0 : i64, tpu.core_type = #tpu.core_type<tc>} {
    %c0 = arith.constant 0 : index
    %c0_0 = arith.constant 0 : index
    %0 = vector.load %arg0[%c0, %c0_0] : memref<16x16xf32, #tpu.memory_space<vmem>>, vector<16x16xf32>
    %c0_1 = arith.constant 0 : index
    %c0_2 = arith.constant 0 : index
    %1 = vector.load %arg1[%c0_1, %c0_2] : memref<16x128xf32, #tpu.memory_space<vmem>>, vector<16x128xf32>
    %c0_3 = arith.constant 0 : index
    %c0_4 = arith.constant 0 : index
    %2 = vector.load %arg2[%c0_3, %c0_4] : memref<1x128xf32, #tpu.memory_space<vmem>>, vector<1x128xf32>
    %c0_5 = arith.constant 0 : index
    %c0_6 = arith.constant 0 : index
    %3 = vector.load %arg3[%c0_5, %c0_6] : memref<128x128xf32, #tpu.memory_space<vmem>>, vector<128x128xf32>
    %c0_7 = arith.constant 0 : index
    %c0_8 = arith.constant 0 : index
    %4 = vector.load %arg4[%c0_7, %c0_8] : memref<1x128xf32, #tpu.memory_space<vmem>>, vector<1x128xf32>
    %5 = arith.truncf %0 : vector<16x16xf32> to vector<16x16xbf16>
    %6 = arith.truncf %1 : vector<16x128xf32> to vector<16x128xbf16>
    %cst = arith.constant dense<0.000000e+00> : vector<16x128xf32>
    %7 = tpu.matmul %5, %6, %cst {dimension_numbers = #tpu.dot_dimension_numbers<[1], [0], [0], [1], [0, 0, 1, 1], [], []>} : vector<16x16xbf16>, vector<16x128xbf16>, vector<16x128xf32> -> vector<16x128xf32>
    %8 = vector.broadcast %2 : vector<1x128xf32> to vector<16x128xf32>
    %9 = arith.addf %7, %8 : vector<16x128xf32>
    %cst_9 = arith.constant dense<0.000000e+00> : vector<128xf32>
    %10 = vector.multi_reduction <add>, %9, %cst_9 [0] : vector<16x128xf32> to vector<128xf32>
    %11 = vector.shape_cast %10 : vector<128xf32> to vector<1x128xf32>
    %cst_10 = arith.constant 1.600000e+01 : f32
    %12 = vector.broadcast %cst_10 : f32 to vector<1x128xf32>
    %13 = arith.divf %11, %12 : vector<1x128xf32>
    %14 = vector.broadcast %13 : vector<1x128xf32> to vector<16x128xf32>
    %15 = arith.subf %9, %14 : vector<16x128xf32>
    %16 = arith.mulf %15, %15 : vector<16x128xf32>
    %cst_11 = arith.constant dense<0.000000e+00> : vector<128xf32>
    %17 = vector.multi_reduction <add>, %16, %cst_11 [0] : vector<16x128xf32> to vector<128xf32>
    %18 = vector.shape_cast %17 : vector<128xf32> to vector<1x128xf32>
    %cst_12 = arith.constant 1.600000e+01 : f32
    %19 = vector.broadcast %cst_12 : f32 to vector<1x128xf32>
    %20 = arith.divf %18, %19 : vector<1x128xf32>
    %21 = vector.broadcast %13 : vector<1x128xf32> to vector<16x128xf32>
    %22 = arith.subf %9, %21 : vector<16x128xf32>
    %cst_13 = arith.constant 9.99999974E-6 : f32
    %23 = vector.broadcast %cst_13 : f32 to vector<1x128xf32>
    %24 = arith.addf %20, %23 : vector<1x128xf32>
    %25 = math.rsqrt %24 : vector<1x128xf32>
    %26 = vector.broadcast %25 : vector<1x128xf32> to vector<16x128xf32>
    %27 = arith.mulf %22, %26 : vector<16x128xf32>
    %28 = arith.truncf %27 : vector<16x128xf32> to vector<16x128xbf16>
    %29 = arith.truncf %3 : vector<128x128xf32> to vector<128x128xbf16>
    %cst_14 = arith.constant dense<0.000000e+00> : vector<16x128xf32>
    %30 = tpu.matmul %28, %29, %cst_14 {dimension_numbers = #tpu.dot_dimension_numbers<[1], [0], [0], [1], [0, 0, 1, 1], [], []>} : vector<16x128xbf16>, vector<128x128xbf16>, vector<16x128xf32> -> vector<16x128xf32>
    %31 = vector.broadcast %4 : vector<1x128xf32> to vector<16x128xf32>
    %32 = arith.addf %30, %31 : vector<16x128xf32>
    %cst_15 = arith.constant 0.000000e+00 : f32
    %33 = vector.broadcast %cst_15 : f32 to vector<16x128xf32>
    %34 = arith.maximumf %32, %33 : vector<16x128xf32>
    %c0_16 = arith.constant 0 : index
    %c0_17 = arith.constant 0 : index
    %35 = vector.load %arg10[%c0_16, %c0_17] : memref<16x128xf32, #tpu.memory_space<vmem>>, vector<16x128xf32>
    tpu.vector_store %arg10[%c0_16, %c0_17], %34 {strides = array<i32>} : memref<16x128xf32, #tpu.memory_space<vmem>>, vector<16x128xf32>,
    %c0_18 = arith.constant 0 : index
    %c0_19 = arith.constant 0 : index
    %36 = vector.load %arg5[%c0_18, %c0_19] : memref<8x16xf32, #tpu.memory_space<vmem>>, vector<8x16xf32>
    %c0_20 = arith.constant 0 : index
    %c0_21 = arith.constant 0 : index
    %37 = vector.load %arg6[%c0_20, %c0_21] : memref<16x128xf32, #tpu.memory_space<vmem>>, vector<16x128xf32>
    %c0_22 = arith.constant 0 : index
    %c0_23 = arith.constant 0 : index
    %38 = vector.load %arg7[%c0_22, %c0_23] : memref<1x128xf32, #tpu.memory_space<vmem>>, vector<1x128xf32>
    %c0_24 = arith.constant 0 : index
    %c0_25 = arith.constant 0 : index
    %39 = vector.load %arg8[%c0_24, %c0_25] : memref<128x128xf32, #tpu.memory_space<vmem>>, vector<128x128xf32>
    %c0_26 = arith.constant 0 : index
    %c0_27 = arith.constant 0 : index
    %40 = vector.load %arg9[%c0_26, %c0_27] : memref<1x128xf32, #tpu.memory_space<vmem>>, vector<1x128xf32>
    %41 = arith.truncf %36 : vector<8x16xf32> to vector<8x16xbf16>
    %42 = arith.truncf %37 : vector<16x128xf32> to vector<16x128xbf16>
    %cst_28 = arith.constant dense<0.000000e+00> : vector<8x128xf32>
    %43 = tpu.matmul %41, %42, %cst_28 {dimension_numbers = #tpu.dot_dimension_numbers<[1], [0], [0], [1], [0, 0, 1, 1], [], []>} : vector<8x16xbf16>, vector<16x128xbf16>, vector<8x128xf32> -> vector<8x128xf32>
    %44 = vector.broadcast %38 : vector<1x128xf32> to vector<8x128xf32>
    %45 = arith.addf %43, %44 : vector<8x128xf32>
    %cst_29 = arith.constant dense<0.000000e+00> : vector<128xf32>
    %46 = vector.multi_reduction <add>, %45, %cst_29 [0] : vector<8x128xf32> to vector<128xf32>
    %47 = vector.shape_cast %46 : vector<128xf32> to vector<1x128xf32>
    %cst_30 = arith.constant 8.000000e+00 : f32
    %48 = vector.broadcast %cst_30 : f32 to vector<1x128xf32>
    %49 = arith.divf %47, %48 : vector<1x128xf32>
    %50 = vector.broadcast %49 : vector<1x128xf32> to vector<8x128xf32>
    %51 = arith.subf %45, %50 : vector<8x128xf32>
    %52 = arith.mulf %51, %51 : vector<8x128xf32>
    %cst_31 = arith.constant dense<0.000000e+00> : vector<128xf32>
    %53 = vector.multi_reduction <add>, %52, %cst_31 [0] : vector<8x128xf32> to vector<128xf32>
    %54 = vector.shape_cast %53 : vector<128xf32> to vector<1x128xf32>
    %cst_32 = arith.constant 8.000000e+00 : f32
    %55 = vector.broadcast %cst_32 : f32 to vector<1x128xf32>
    %56 = arith.divf %54, %55 : vector<1x128xf32>
    %57 = vector.broadcast %49 : vector<1x128xf32> to vector<8x128xf32>
    %58 = arith.subf %45, %57 : vector<8x128xf32>
    %cst_33 = arith.constant 9.99999974E-6 : f32
    %59 = vector.broadcast %cst_33 : f32 to vector<1x128xf32>
    %60 = arith.addf %56, %59 : vector<1x128xf32>
    %61 = math.rsqrt %60 : vector<1x128xf32>
    %62 = vector.broadcast %61 : vector<1x128xf32> to vector<8x128xf32>
    %63 = arith.mulf %58, %62 : vector<8x128xf32>
    %64 = arith.truncf %63 : vector<8x128xf32> to vector<8x128xbf16>
    %65 = arith.truncf %39 : vector<128x128xf32> to vector<128x128xbf16>
    %cst_34 = arith.constant dense<0.000000e+00> : vector<8x128xf32>
    %66 = tpu.matmul %64, %65, %cst_34 {dimension_numbers = #tpu.dot_dimension_numbers<[1], [0], [0], [1], [0, 0, 1, 1], [], []>} : vector<8x128xbf16>, vector<128x128xbf16>, vector<8x128xf32> -> vector<8x128xf32>
    %67 = vector.broadcast %40 : vector<1x128xf32> to vector<8x128xf32>
    %68 = arith.addf %66, %67 : vector<8x128xf32>
    %cst_35 = arith.constant 0.000000e+00 : f32
    %69 = vector.broadcast %cst_35 : f32 to vector<8x128xf32>
    %70 = arith.maximumf %68, %69 : vector<8x128xf32>
    %c0_36 = arith.constant 0 : index
    %c0_37 = arith.constant 0 : index
    %71 = vector.load %arg11[%c0_36, %c0_37] : memref<8x128xf32, #tpu.memory_space<vmem>>, vector<8x128xf32>
    tpu.vector_store %arg11[%c0_36, %c0_37], %70 {strides = array<i32>} : memref<8x128xf32, #tpu.memory_space<vmem>>, vector<8x128xf32>,
    return
  }
}

</mosaic_0001>

<llo_original>
// kernel: tpu_custom_call.1
$region0: #{tpu_custom_call.1}
  #allocation0 [shape = 'u32[]', space=smem, size = 0x4, offset = 0x4, fixed_abs, tag = 'smem constant byte address 0x4 - core index']
  #allocation1 [shape = 'u32[144,128]{1,0:T(1,128)}', space=vmem, size = 0x12000, scoped, tag = 'internal scratch']
  %s0 = inlined_call_operand.hbm [shape: f32[16,16], index: 0, kind: input, shape index: {}]
  %s1 = inlined_call_operand.hbm [shape: f32[16,128], index: 1, kind: input, shape index: {}]
  %s2 = inlined_call_operand.vmem [shape: f32[1,128], index: 2, kind: input, shape index: {}]
  %s3 = inlined_call_operand.hbm [shape: f32[128,128], index: 3, kind: input, shape index: {}]
  %s4 = inlined_call_operand.hbm [shape: f32[1,128], index: 4, kind: input, shape index: {}]
  %s5 = inlined_call_operand.vmem [shape: f32[8,16], index: 5, kind: input, shape index: {}]
  %s6 = inlined_call_operand.hbm [shape: f32[16,128], index: 6, kind: input, shape index: {}]
  %s7 = inlined_call_operand.vmem [shape: f32[1,128], index: 7, kind: input, shape index: {}]
  %s8 = inlined_call_operand.hbm [shape: f32[128,128], index: 8, kind: input, shape index: {}]
  %s9 = inlined_call_operand.vmem [shape: f32[1,128], index: 9, kind: input, shape index: {}]
  %s10 = inlined_call_operand.hbm [shape: f32[16,128], index: 10, kind: output, shape index: {0}]
  %s11 = inlined_call_operand.hbm [shape: f32[8,128], index: 11, kind: output, shape index: {1}]
  %12 = xla_tuple %s10, %s11
  %s13 = sld [smem:[#allocation0]]
  $region82: #{tpu_custom_call.1} parent=0
    _
  %s15 = ssub.s32 1, %s13
  %s16 = scalar_select 0, %s15, %s13
  $region1: #{tpu_custom_call.1} parent=0
    #allocation2 [shape = 'u8[8192]{0}', space=vmem, size = 0x2000, scoped, tag = 'input window, operand 0, single buffered']
    #allocation3 [shape = 's32[1]{0}', space=sflag, size = 0x4, scoped, tag = 'scoped memory for tpu_custom_call.1']
    #allocation4 [shape = 's32[1]{0}', space=sflag, size = 0x4, scoped, tag = 'scoped memory for tpu_custom_call.1']
    #allocation5 [shape = 'u8[8192]{0}', space=vmem, size = 0x2000, scoped, tag = 'input window, operand 1, single buffered']
    #allocation6 [shape = 's32[1]{0}', space=sflag, size = 0x4, scoped, tag = 'scoped memory for tpu_custom_call.1']
    #allocation7 [shape = 'u8[65536]{0}', space=vmem, size = 0x10000, scoped, tag = 'input window, operand 3, single buffered']
    #allocation8 [shape = 'u8[512]{0}', space=vmem, size = 0x400, scoped, tag = 'input window, operand 4, single buffered']
    #allocation9 [shape = 's32[1]{0}', space=sflag, size = 0x4, scoped, tag = 'scoped memory for tpu_custom_call.1']
    #allocation10 [shape = 'u8[8192]{0}', space=vmem, size = 0x2000, scoped, tag = 'input window, operand 6, single buffered']
    #allocation11 [shape = 'u8[65536]{0}', space=vmem, size = 0x10000, scoped, tag = 'input window, operand 8, single buffered']
    #allocation12 [shape = 's32[1]{0}', space=sflag, size = 0x4, scoped, tag = 'scoped memory for tpu_custom_call.1']
    #allocation13 [shape = 'u8[8192]{0}', space=vmem, size = 0x2000, scoped, tag = 'output window, operand 0, single buffered']
    #allocation14 [shape = 'u8[4096]{0}', space=vmem, size = 0x1000, scoped, tag = 'output window, operand 1, single buffered']
    #allocation15 [shape = 's32[1]{0}', space=sflag, size = 0x4, scoped, tag = 'scoped memory for tpu_custom_call.1']
    %17 = vsyncpa [#allocation3], 0
    %18 = vsyncpa [#allocation6], 0
    %19 = vsyncpa [#allocation9], 0
    %20 = vsyncpa [#allocation12], 0
    %21 = vsyncpa [#allocation4], 0
    %22 = vsyncpa [#allocation15], 0
    // Predicated region
    $region2: #{tpu_custom_call.1} parent=1 // pred_check
      _
    $region3: #{tpu_custom_call.1} parent=1 // pred_check_branch
      %24 = sbr.rel (0) target = $region5
    $region4: #{tpu_custom_call.1} parent=1 // pred_region
      %s26 = ssub.s32 256, 256
      %27 = vsyncadd [#allocation3], %s26
      %s28 = sshll.u32 [#allocation2], 4
      %s29 = int_to_ptr.vmem [resolvable:$true] %s28
      %34 = dma.hbm_to_vmem [thread:$0]  %s0, 256, %s29, [#allocation3], 128, 128, 8
    $region5: #{tpu_custom_call.1} parent=1 // pred_fallthru
      _
    // Predicated region
    $region6: #{tpu_custom_call.1} parent=1 // pred_check
      _
    $region7: #{tpu_custom_call.1} parent=1 // pred_check_branch
      %36 = sbr.rel (0) target = $region9
    $region8: #{tpu_custom_call.1} parent=1 // pred_region
      %s38 = ssub.s32 256, 256
      %39 = vsyncadd [#allocation6], %s38
      %s40 = sshll.u32 [#allocation5], 4
      %s41 = int_to_ptr.vmem [resolvable:$true] %s40
      %46 = dma.hbm_to_vmem [thread:$0]  %s1, 256, %s41, [#allocation6], 128, 128, 8
    $region9: #{tpu_custom_call.1} parent=1 // pred_fallthru
      _
    // Predicated region
    $region10: #{tpu_custom_call.1} parent=1 // pred_check
      _
    $region11: #{tpu_custom_call.1} parent=1 // pred_check_branch
      %48 = sbr.rel (0) target = $region13
    $region12: #{tpu_custom_call.1} parent=1 // pred_region
      _
    $region13: #{tpu_custom_call.1} parent=1 // pred_fallthru
      _
    // Predicated region
    $region14: #{tpu_custom_call.1} parent=1 // pred_check
      _
    $region15: #{tpu_custom_call.1} parent=1 // pred_check_branch
      %50 = sbr.rel (0) target = $region17
    $region16: #{tpu_custom_call.1} parent=1 // pred_region
      %s52 = ssub.s32 2048, 2048
      %53 = vsyncadd [#allocation6], %s52
      %s54 = sshll.u32 [#allocation7], 4
      %s55 = int_to_ptr.vmem [resolvable:$true] %s54
      %60 = dma.hbm_to_vmem [thread:$0]  %s3, 2048, %s55, [#allocation6], 128, 128, 8
    $region17: #{tpu_custom_call.1} parent=1 // pred_fallthru
      _
    // Predicated region
    $region18: #{tpu_custom_call.1} parent=1 // pred_check
      _
    $region19: #{tpu_custom_call.1} parent=1 // pred_check_branch
      %62 = sbr.rel (0) target = $region21
    $region20: #{tpu_custom_call.1} parent=1 // pred_region
      %s64 = ssub.s32 16, 16
      %65 = vsyncadd [#allocation9], %s64
      %s67 = sshll.u32 [#allocation8], 4
      %s68 = int_to_ptr.vmem [resolvable:$true] %s67
      %70 = dma.hbm_to_vmem [thread:$0]  %s4, 16, %s68, [#allocation9]
    $region21: #{tpu_custom_call.1} parent=1 // pred_fallthru
      _
    // Predicated region
    $region22: #{tpu_custom_call.1} parent=1 // pred_check
      _
    $region23: #{tpu_custom_call.1} parent=1 // pred_check_branch
      %72 = sbr.rel (0) target = $region25
    $region24: #{tpu_custom_call.1} parent=1 // pred_region
      _
    $region25: #{tpu_custom_call.1} parent=1 // pred_fallthru
      _
    // Predicated region
    $region26: #{tpu_custom_call.1} parent=1 // pred_check
      _
    $region27: #{tpu_custom_call.1} parent=1 // pred_check_branch
      %74 = sbr.rel (0) target = $region29
    $region28: #{tpu_custom_call.1} parent=1 // pred_region
      %s76 = ssub.s32 256, 256
      %77 = vsyncadd [#allocation9], %s76
      %s78 = sshll.u32 [#allocation10], 4
      %s79 = int_to_ptr.vmem [resolvable:$true] %s78
      %84 = dma.hbm_to_vmem [thread:$0]  %s6, 256, %s79, [#allocation9], 128, 128, 8
    $region29: #{tpu_custom_call.1} parent=1 // pred_fallthru
      _
    // Predicated region
    $region30: #{tpu_custom_call.1} parent=1 // pred_check
      _
    $region31: #{tpu_custom_call.1} parent=1 // pred_check_branch
      %86 = sbr.rel (0) target = $region33
    $region32: #{tpu_custom_call.1} parent=1 // pred_region
      _
    $region33: #{tpu_custom_call.1} parent=1 // pred_fallthru
      _
    // Predicated region
    $region34: #{tpu_custom_call.1} parent=1 // pred_check
      _
    $region35: #{tpu_custom_call.1} parent=1 // pred_check_branch
      %88 = sbr.rel (0) target = $region37
    $region36: #{tpu_custom_call.1} parent=1 // pred_region
      %s90 = ssub.s32 2048, 2048
      %91 = vsyncadd [#allocation12], %s90
      %s92 = sshll.u32 [#allocation11], 4
      %s93 = int_to_ptr.vmem [resolvable:$true] %s92
      %98 = dma.hbm_to_vmem [thread:$0]  %s8, 2048, %s93, [#allocation12], 128, 128, 8
    $region37: #{tpu_custom_call.1} parent=1 // pred_fallthru
      _
    // Predicated region
    $region38: #{tpu_custom_call.1} parent=1 // pred_check
      _
    $region39: #{tpu_custom_call.1} parent=1 // pred_check_branch
      %100 = sbr.rel (0) target = $region41
    $region40: #{tpu_custom_call.1} parent=1 // pred_region
      _
    $region41: #{tpu_custom_call.1} parent=1 // pred_fallthru
      _
    // Predicated region
    $region42: #{tpu_custom_call.1} parent=1 // pred_check
      _
    $region43: #{tpu_custom_call.1} parent=1 // pred_check_branch
      %102 = sbr.rel (0) target = $region45
    $region44: #{tpu_custom_call.1} parent=1 // pred_region
      %103 = dma.done [#allocation3], 256
    $region45: #{tpu_custom_call.1} parent=1 // pred_fallthru
      _
    // Predicated region
    $region46: #{tpu_custom_call.1} parent=1 // pred_check
      _
    $region47: #{tpu_custom_call.1} parent=1 // pred_check_branch
      %105 = sbr.rel (0) target = $region49
    $region48: #{tpu_custom_call.1} parent=1 // pred_region
      %106 = dma.done [#allocation6], 256
    $region49: #{tpu_custom_call.1} parent=1 // pred_fallthru
      _
    // Predicated region
    $region50: #{tpu_custom_call.1} parent=1 // pred_check
      _
    $region51: #{tpu_custom_call.1} parent=1 // pred_check_branch
      %108 = sbr.rel (0) target = $region53
    $region52: #{tpu_custom_call.1} parent=1 // pred_region
      %109 = dma.done [#allocation6], 2048
    $region53: #{tpu_custom_call.1} parent=1 // pred_fallthru
      _
    // Predicated region
    $region54: #{tpu_custom_call.1} parent=1 // pred_check
      _
    $region55: #{tpu_custom_call.1} parent=1 // pred_check_branch
      %111 = sbr.rel (0) target = $region57
    $region56: #{tpu_custom_call.1} parent=1 // pred_region
      %112 = dma.done [#allocation9], 16
    $region57: #{tpu_custom_call.1} parent=1 // pred_fallthru
      _
    // Predicated region
    $region58: #{tpu_custom_call.1} parent=1 // pred_check
      _
    $region59: #{tpu_custom_call.1} parent=1 // pred_check_branch
      %114 = sbr.rel (0) target = $region61
    $region60: #{tpu_custom_call.1} parent=1 // pred_region
      %115 = dma.done [#allocation9], 256
    $region61: #{tpu_custom_call.1} parent=1 // pred_fallthru
      _
    // Predicated region
    $region62: #{tpu_custom_call.1} parent=1 // pred_check
      _
    $region63: #{tpu_custom_call.1} parent=1 // pred_check_branch
      %117 = sbr.rel (0) target = $region65
    $region64: #{tpu_custom_call.1} parent=1 // pred_region
      %118 = dma.done [#allocation12], 2048
    $region65: #{tpu_custom_call.1} parent=1 // pred_fallthru
      _
    %v120 = vld [vmem:[#allocation2] sm:$0xff]
    %v121 = vld [vmem:[#allocation2 + $0x8] sm:$0xff]
    %v122 = vld [vmem:[#allocation5] sm:$0xff]
    %v123 = vld [vmem:[#allocation5 + $0x8] sm:$0xff]
    %v124 = vld [vmem:[%s2] sm:$0x1]
    %v125 = vld [vmem:[#allocation7] sm:$0xff]
    %v126 = vld [vmem:[#allocation7 + $0x8] sm:$0xff]
    %v127 = vld [vmem:[#allocation7 + $0x10] sm:$0xff]
    %v128 = vld [vmem:[#allocation7 + $0x18] sm:$0xff]
    %v129 = vld [vmem:[#allocation7 + $0x20] sm:$0xff]
    %v130 = vld [vmem:[#allocation7 + $0x28] sm:$0xff]
    %v131 = vld [vmem:[#allocation7 + $0x30] sm:$0xff]
    %v132 = vld [vmem:[#allocation7 + $0x38] sm:$0xff]
    %v133 = vld [vmem:[#allocation7 + $0x40] sm:$0xff]
    %v134 = vld [vmem:[#allocation7 + $0x48] sm:$0xff]
    %v135 = vld [vmem:[#allocation7 + $0x50] sm:$0xff]
    %v136 = vld [vmem:[#allocation7 + $0x58] sm:$0xff]
    %v137 = vld [vmem:[#allocation7 + $0x60] sm:$0xff]
    %v138 = vld [vmem:[#allocation7 + $0x68] sm:$0xff]
    %v139 = vld [vmem:[#allocation7 + $0x70] sm:$0xff]
    %v140 = vld [vmem:[#allocation7 + $0x78] sm:$0xff]
    %v141 = vld [vmem:[#allocation8] sm:$0x1]
    %v142 = vpack.c.bf16 %v121, %v120
    %v143 = vpack.c.bf16 %v123, %v122
    %v145 = vlaneseq
    %v146 = vshrl.u32 %v145, 7
    %v147 = vsub.s32 0, %v146
    %v148 = vrot.slane %v124, %v147
    %vm150 = vcmask 130048
    %v152 = vsel %vm150, %v142, 0
    %154 = vmatprep.subr.bf16.mxu0 0
    %155 = vmatpush1.bf16.msra.mxu0 0
    %156 = vmatprep.subr.bf16.mxu0 0
    %157 = vmatpush1.bf16.msra.mxu0 0
    %158 = vmatprep.subr.bf16.mxu0 0
    %159 = vmatpush1.bf16.msra.mxu0 0
    %160 = vmatprep.subr.bf16.mxu0 0
    %161 = vmatpush1.bf16.msra.mxu0 0
    %162 = vmatprep.subr.bf16.mxu0 0
    %163 = vmatpush1.bf16.msra.mxu0 0
    %164 = vmatprep.subr.bf16.mxu0 0
    %165 = vmatpush1.bf16.msra.mxu0 0
    %166 = vmatprep.subr.bf16.mxu0 0
    %167 = vmatpush1.bf16.msra.mxu0 0
    %168 = vmatprep.subr.bf16.mxu0 0
    %169 = vmatpush1.bf16.msra.mxu0 %v143
    %170 = vmatprep.subr.bf16.mxu0 0
    %171 = vmatpush2.bf16.msra.mxu0 0
    %172 = vmatprep.subr.bf16.mxu0 0
    %173 = vmatpush2.bf16.msra.mxu0 0
    %174 = vmatprep.subr.bf16.mxu0 0
    %175 = vmatpush2.bf16.msra.mxu0 0
    %176 = vmatprep.subr.bf16.mxu0 0
    %177 = vmatpush2.bf16.msra.mxu0 0
    %178 = vmatprep.subr.bf16.mxu0 0
    %179 = vmatpush2.bf16.msra.mxu0 0
    %180 = vmatprep.subr.bf16.mxu0 0
    %181 = vmatpush2.bf16.msra.mxu0 0
    %182 = vmatprep.subr.bf16.mxu0 0
    %183 = vmatpush2.bf16.msra.mxu0 0
    %184 = vmatprep.subr.bf16.mxu0 0
    %185 = vmatpush2.bf16.msra.mxu0 0
    %186 = vmatprep.mubr.bf16.mxu0 0
    %187 = vmatmul.mubr.bf16.gmra.mxu0 %v152
    %v188 = vpop.f32.mrf.mxu0
    %v189 = vadd.f32 %v148, %v188
    %v190 = vpop.f32.mrf.mxu0
    %v191 = vpop.f32.mrf.mxu0
    %v192 = vadd.f32 %v148, %v191
    %v193 = vpop.f32.mrf.mxu0
    %194 = vdwg.mxu0
    %v195 = vadd.f32 %v189, %v192
    %v196 = vrot.slane %v195, 4
    %v197 = vadd.f32 %v195, %v196
    %v198 = vrot.slane %v197, 2
    %v199 = vadd.f32 %v197, %v198
    %v200 = vrot.slane %v199, 1
    %v201 = vadd.f32 %v199, %v200
    %v202 = vrcp.pop 16.0
    %v203 = vmul.f32 %v201, %v202
    %v204 = vsub.f32 %v189, %v203
    %v205 = vsub.f32 %v192, %v203
    %v206 = vmul.f32 %v204, %v204
    %v207 = vmul.f32 %v205, %v205
    %v208 = vadd.f32 %v206, %v207
    %v209 = vrot.slane %v208, 4
    %v210 = vadd.f32 %v208, %v209
    %v211 = vrot.slane %v210, 2
    %v212 = vadd.f32 %v210, %v211
    %v213 = vrot.slane %v212, 1
    %v214 = vadd.f32 %v212, %v213
    %v215 = vmul.f32 %v214, %v202
    %v216 = vadd.f32 %v215, 1e-05
    %v217 = vrsqrt.pop %v216
    %v218 = vmul.f32 %v204, %v217
    %v219 = vmul.f32 %v205, %v217
    %v220 = vpack.c.bf16 %v219, %v218
    %v221 = vpack.c.bf16 %v126, %v125
    %v222 = vpack.c.bf16 %v128, %v127
    %v223 = vpack.c.bf16 %v130, %v129
    %v224 = vpack.c.bf16 %v132, %v131
    %v225 = vpack.c.bf16 %v134, %v133
    %v226 = vpack.c.bf16 %v136, %v135
    %v227 = vpack.c.bf16 %v138, %v137
    %v228 = vpack.c.bf16 %v140, %v139
    %v230 = vlaneseq
    %v231 = vshrl.u32 %v230, 7
    %v232 = vsub.s32 0, %v231
    %v233 = vrot.slane %v141, %v232
    %235 = vmatprep.subr.bf16.mxu0 0
    %236 = vmatpush1.bf16.msra.mxu0 %v228
    %237 = vmatprep.subr.bf16.mxu0 0
    %238 = vmatpush1.bf16.msra.mxu0 %v227
    %239 = vmatprep.subr.bf16.mxu0 0
    %240 = vmatpush1.bf16.msra.mxu0 %v226
    %241 = vmatprep.subr.bf16.mxu0 0
    %242 = vmatpush1.bf16.msra.mxu0 %v225
    %243 = vmatprep.subr.bf16.mxu0 0
    %244 = vmatpush1.bf16.msra.mxu0 %v224
    %245 = vmatprep.subr.bf16.mxu0 0
    %246 = vmatpush1.bf16.msra.mxu0 %v223
    %247 = vmatprep.subr.bf16.mxu0 0
    %248 = vmatpush1.bf16.msra.mxu0 %v222
    %249 = vmatprep.subr.bf16.mxu0 0
    %250 = vmatpush1.bf16.msra.mxu0 %v221
    %251 = vmatprep.subr.bf16.mxu0 0
    %252 = vmatpush2.bf16.msra.mxu0 0
    %253 = vmatprep.subr.bf16.mxu0 0
    %254 = vmatpush2.bf16.msra.mxu0 0
    %255 = vmatprep.subr.bf16.mxu0 0
    %256 = vmatpush2.bf16.msra.mxu0 0
    %257 = vmatprep.subr.bf16.mxu0 0
    %258 = vmatpush2.bf16.msra.mxu0 0
    %259 = vmatprep.subr.bf16.mxu0 0
    %260 = vmatpush2.bf16.msra.mxu0 0
    %261 = vmatprep.subr.bf16.mxu0 0
    %262 = vmatpush2.bf16.msra.mxu0 0
    %263 = vmatprep.subr.bf16.mxu0 0
    %264 = vmatpush2.bf16.msra.mxu0 0
    %265 = vmatprep.subr.bf16.mxu0 0
    %266 = vmatpush2.bf16.msra.mxu0 0
    %267 = vmatprep.mubr.bf16.mxu0 0
    %268 = vmatmul.mubr.bf16.gmra.mxu0 %v220
    %v269 = vpop.f32.mrf.mxu0
    %v270 = vadd.f32 %v233, %v269
    %v271 = vpop.f32.mrf.mxu0
    %v272 = vpop.f32.mrf.mxu0
    %v273 = vadd.f32 %v233, %v272
    %v274 = vpop.f32.mrf.mxu0
    %275 = vdwg.mxu0
    %v276 = vmax.f32 %v270, 0.0
    %v277 = vmax.f32 %v273, 0.0
    %278 = vst [vmem:[#allocation13] sm:$0xff] %v276
    %279 = vst [vmem:[#allocation13 + $0x8] sm:$0xff] %v277
    %v280 = vld [vmem:[%s5] sm:$0xff]
    %v281 = vld [vmem:[#allocation10] sm:$0xff]
    %v282 = vld [vmem:[#allocation10 + $0x8] sm:$0xff]
    %v283 = vld [vmem:[%s7] sm:$0x1]
    %v284 = vld [vmem:[#allocation11] sm:$0xff]
    %v285 = vld [vmem:[#allocation11 + $0x8] sm:$0xff]
    %v286 = vld [vmem:[#allocation11 + $0x10] sm:$0xff]
    %v287 = vld [vmem:[#allocation11 + $0x18] sm:$0xff]
    %v288 = vld [vmem:[#allocation11 + $0x20] sm:$0xff]
    %v289 = vld [vmem:[#allocation11 + $0x28] sm:$0xff]
    %v290 = vld [vmem:[#allocation11 + $0x30] sm:$0xff]
    %v291 = vld [vmem:[#allocation11 + $0x38] sm:$0xff]
    %v292 = vld [vmem:[#allocation11 + $0x40] sm:$0xff]
    %v293 = vld [vmem:[#allocation11 + $0x48] sm:$0xff]
    %v294 = vld [vmem:[#allocation11 + $0x50] sm:$0xff]
    %v295 = vld [vmem:[#allocation11 + $0x58] sm:$0xff]
    %v296 = vld [vmem:[#allocation11 + $0x60] sm:$0xff]
    %v297 = vld [vmem:[#allocation11 + $0x68] sm:$0xff]
    %v298 = vld [vmem:[#allocation11 + $0x70] sm:$0xff]
    %v299 = vld [vmem:[#allocation11 + $0x78] sm:$0xff]
    %v300 = vld [vmem:[%s9] sm:$0x1]
    %v301 = vpack.c.bf16 %v280, %v280
    %v302 = vpack.c.bf16 %v282, %v281
    %v304 = vlaneseq
    %v305 = vshrl.u32 %v304, 7
    %v306 = vsub.s32 0, %v305
    %v307 = vrot.slane %v283, %v306
    %v310 = vsel %vm150, %v301, 0
    %312 = vmatprep.subr.bf16.mxu0 0
    %313 = vmatpush1.bf16.msra.mxu0 0
    %314 = vmatprep.subr.bf16.mxu0 0
    %315 = vmatpush1.bf16.msra.mxu0 0
    %316 = vmatprep.subr.bf16.mxu0 0
    %317 = vmatpush1.bf16.msra.mxu0 0
    %318 = vmatprep.subr.bf16.mxu0 0
    %319 = vmatpush1.bf16.msra.mxu0 0
    %320 = vmatprep.subr.bf16.mxu0 0
    %321 = vmatpush1.bf16.msra.mxu0 0
    %322 = vmatprep.subr.bf16.mxu0 0
    %323 = vmatpush1.bf16.msra.mxu0 0
    %324 = vmatprep.subr.bf16.mxu0 0
    %325 = vmatpush1.bf16.msra.mxu0 0
    %326 = vmatprep.subr.bf16.mxu0 0
    %327 = vmatpush1.bf16.msra.mxu0 %v302
    %328 = vmatprep.subr.bf16.mxu0 0
    %329 = vmatpush2.bf16.msra.mxu0 0
    %330 = vmatprep.subr.bf16.mxu0 0
    %331 = vmatpush2.bf16.msra.mxu0 0
    %332 = vmatprep.subr.bf16.mxu0 0
    %333 = vmatpush2.bf16.msra.mxu0 0
    %334 = vmatprep.subr.bf16.mxu0 0
    %335 = vmatpush2.bf16.msra.mxu0 0
    %336 = vmatprep.subr.bf16.mxu0 0
    %337 = vmatpush2.bf16.msra.mxu0 0
    %338 = vmatprep.subr.bf16.mxu0 0
    %339 = vmatpush2.bf16.msra.mxu0 0
    %340 = vmatprep.subr.bf16.mxu0 0
    %341 = vmatpush2.bf16.msra.mxu0 0
    %342 = vmatprep.subr.bf16.mxu0 0
    %343 = vmatpush2.bf16.msra.mxu0 0
    %344 = vmatprep.mubr.bf16.mxu0 0
    %345 = vmatmul.mubr.bf16.gmra.mxu0 %v310
    %v346 = vpop.f32.mrf.mxu0
    %v347 = vadd.f32 %v307, %v346
    %v348 = vpop.f32.mrf.mxu0
    %v349 = vpop.f32.mrf.mxu0
    %v350 = vpop.f32.mrf.mxu0
    %351 = vdwg.mxu0
    %v352 = vrot.slane %v347, 4
    %v353 = vadd.f32 %v347, %v352
    %v354 = vrot.slane %v353, 2
    %v355 = vadd.f32 %v353, %v354
    %v356 = vrot.slane %v355, 1
    %v357 = vadd.f32 %v355, %v356
    %v358 = vrcp.pop 8.0
    %v359 = vmul.f32 %v357, %v358
    %v360 = vsub.f32 %v347, %v359
    %v361 = vmul.f32 %v360, %v360
    %v362 = vrot.slane %v361, 4
    %v363 = vadd.f32 %v361, %v362
    %v364 = vrot.slane %v363, 2
    %v365 = vadd.f32 %v363, %v364
    %v366 = vrot.slane %v365, 1
    %v367 = vadd.f32 %v365, %v366
    %v368 = vmul.f32 %v367, %v358
    %v369 = vadd.f32 %v368, 1e-05
    %v370 = vrsqrt.pop %v369
    %v371 = vmul.f32 %v360, %v370
    %v372 = vpack.c.bf16 %v371, %v371
    %v373 = vpack.c.bf16 %v285, %v284
    %v374 = vpack.c.bf16 %v287, %v286
    %v375 = vpack.c.bf16 %v289, %v288
    %v376 = vpack.c.bf16 %v291, %v290
    %v377 = vpack.c.bf16 %v293, %v292
    %v378 = vpack.c.bf16 %v295, %v294
    %v379 = vpack.c.bf16 %v297, %v296
    %v380 = vpack.c.bf16 %v299, %v298
    %v382 = vlaneseq
    %v383 = vshrl.u32 %v382, 7
    %v384 = vsub.s32 0, %v383
    %v385 = vrot.slane %v300, %v384
    %387 = vmatprep.subr.bf16.mxu0 0
    %388 = vmatpush1.bf16.msra.mxu0 %v380
    %389 = vmatprep.subr.bf16.mxu0 0
    %390 = vmatpush1.bf16.msra.mxu0 %v379
    %391 = vmatprep.subr.bf16.mxu0 0
    %392 = vmatpush1.bf16.msra.mxu0 %v378
    %393 = vmatprep.subr.bf16.mxu0 0
    %394 = vmatpush1.bf16.msra.mxu0 %v377
    %395 = vmatprep.subr.bf16.mxu0 0
    %396 = vmatpush1.bf16.msra.mxu0 %v376
    %397 = vmatprep.subr.bf16.mxu0 0
    %398 = vmatpush1.bf16.msra.mxu0 %v375
    %399 = vmatprep.subr.bf16.mxu0 0
    %400 = vmatpush1.bf16.msra.mxu0 %v374
    %401 = vmatprep.subr.bf16.mxu0 0
    %402 = vmatpush1.bf16.msra.mxu0 %v373
    %403 = vmatprep.subr.bf16.mxu0 0
    %404 = vmatpush2.bf16.msra.mxu0 0
    %405 = vmatprep.subr.bf16.mxu0 0
    %406 = vmatpush2.bf16.msra.mxu0 0
    %407 = vmatprep.subr.bf16.mxu0 0
    %408 = vmatpush2.bf16.msra.mxu0 0
    %409 = vmatprep.subr.bf16.mxu0 0
    %410 = vmatpush2.bf16.msra.mxu0 0
    %411 = vmatprep.subr.bf16.mxu0 0
    %412 = vmatpush2.bf16.msra.mxu0 0
    %413 = vmatprep.subr.bf16.mxu0 0
    %414 = vmatpush2.bf16.msra.mxu0 0
    %415 = vmatprep.subr.bf16.mxu0 0
    %416 = vmatpush2.bf16.msra.mxu0 0
    %417 = vmatprep.subr.bf16.mxu0 0
    %418 = vmatpush2.bf16.msra.mxu0 0
    %419 = vmatprep.mubr.bf16.mxu0 0
    %420 = vmatmul.mubr.bf16.gmra.mxu0 %v372
    %v421 = vpop.f32.mrf.mxu0
    %v422 = vadd.f32 %v385, %v421
    %v423 = vpop.f32.mrf.mxu0
    %v424 = vpop.f32.mrf.mxu0
    %v425 = vpop.f32.mrf.mxu0
    %426 = vdwg.mxu0
    %v427 = vmax.f32 %v422, 0.0
    %428 = vst [vmem:[#allocation14] sm:$0xff] %v427
    // Predicated region
    $region66: #{tpu_custom_call.1} parent=1 // pred_check
      _
    $region67: #{tpu_custom_call.1} parent=1 // pred_check_branch
      %430 = sbr.rel (0) target = $region69
    $region68: #{tpu_custom_call.1} parent=1 // pred_region
      %s432 = ssub.s32 256, 256
      %433 = vsyncadd [#allocation4], %s432
      %s434 = sshll.u32 [#allocation13], 4
      %s435 = int_to_ptr.vmem [resolvable:$true] %s434
      %440 = dma.vmem_to_hbm [thread:$0]  %s435, 256, %s10, [#allocation4], 128, 128, 8
    $region69: #{tpu_custom_call.1} parent=1 // pred_fallthru
      _
    // Predicated region
    $region70: #{tpu_custom_call.1} parent=1 // pred_check
      _
    $region71: #{tpu_custom_call.1} parent=1 // pred_check_branch
      %442 = sbr.rel (0) target = $region73
    $region72: #{tpu_custom_call.1} parent=1 // pred_region
      %s444 = ssub.s32 128, 128
      %445 = vsyncadd [#allocation15], %s444
      %s447 = sshll.u32 [#allocation14], 4
      %s448 = int_to_ptr.vmem [resolvable:$true] %s447
      %450 = dma.vmem_to_hbm [thread:$0]  %s448, 128, %s11, [#allocation15]
    $region73: #{tpu_custom_call.1} parent=1 // pred_fallthru
      _
    // Predicated region
    $region74: #{tpu_custom_call.1} parent=1 // pred_check
      _
    $region75: #{tpu_custom_call.1} parent=1 // pred_check_branch
      %452 = sbr.rel (0) target = $region77
    $region76: #{tpu_custom_call.1} parent=1 // pred_region
      %453 = dma.done [#allocation4], 256
    $region77: #{tpu_custom_call.1} parent=1 // pred_fallthru
      _
    // Predicated region
    $region78: #{tpu_custom_call.1} parent=1 // pred_check
      _
    $region79: #{tpu_custom_call.1} parent=1 // pred_check_branch
      %455 = sbr.rel (0) target = $region81
    $region80: #{tpu_custom_call.1} parent=1 // pred_region
      %456 = dma.done [#allocation15], 128
    $region81: #{tpu_custom_call.1} parent=1 // pred_fallthru
      _
    %457 = vsyncpa [#allocation3], 1
    %458 = vsyncpa [#allocation6], 1
    %459 = vsyncpa [#allocation9], 1
    %460 = vsyncpa [#allocation12], 1
    %461 = vsyncpa [#allocation4], 1
    %462 = vsyncpa [#allocation15], 1

</llo_original>
